<compile_context>
chip_gen: v5e
topology: v5e:2x2
jax: 0.10.0
libtpu: 0.0.40
codegen_flags: <defaults>
</compile_context>

<pallas_src>
import functools

import jax
import jax.numpy as jnp
from jax.experimental import pallas as pl
from jax.experimental.pallas import tpu as pltpu


# ------------------------------ Parameter packing ------------------------------ #
def _round_up(x, m):
    return (x + m - 1) // m * m


def _pack_param_slab(entries):
    """Pack [(name, (din, dout) array)] into one (R, lanes) f32 slab.

    Each entry starts at an 8-aligned row offset and is zero-padded to the slab
    lane width, so every in-kernel carve is a cheap aligned static slice.
    Returns (slab, layout) with layout[name] = (row0, din, dout).
    """
    lanes = _round_up(max(int(a.shape[1]) for _, a in entries), 128)
    layout = {}
    blocks = []
    r = 0
    for name, arr in entries:
        arr = jnp.asarray(arr, jnp.float32)
        din, dout = int(arr.shape[0]), int(arr.shape[1])
        rows = _round_up(din, 8)
        blk = jnp.zeros((rows, lanes), jnp.float32).at[:din, :dout].set(arr)
        layout[name] = (r, din, dout)
        blocks.append(blk)
        r += rows
    return jnp.concatenate(blocks, axis=0), layout


# ----------------------------- Fused forward kernel ----------------------------- #
def _fused_forward_kernel(x_ref, tx_ref, slab_ref, out_ref, *,
                          layout, n_pre, n_post, Tm1, B, H):
    """Whole forward pass in one invocation.

    x_ref  : (Tm1*B, obs)  == series[:-1] flattened t-major/b-minor
    tx_ref : (Tm1*B, 1)    == series[1:, :, :1] flattened the same way
    slab_ref: packed parameter slab (see _pack_param_slab)
    out_ref: (Tm1*B, num_outputs)
    """

    def param(name):
        r0, din, dout = layout[name]
        return slab_ref[r0:r0 + din, 0:dout]   # static, 8-row-aligned carve

    # --- carve parameters once; they stay VMEM/vreg resident for the whole kernel ---
    pre_params = [(param(f"pre_w_{i}"), param(f"pre_b_{i}")) for i in range(n_pre)]
    w_ih, w_hh, b_lstm = param("w_ih"), param("w_hh"), param("b_lstm")
    p0_wh, p0_wt, p0_b = param("p0_wh"), param("p0_wt"), param("p0_b")
    post_params = [(param(f"post_w_{i}"), param(f"post_b_{i}"))
                   for i in range(1, n_post)]
    fc_w, fc_b = param("fc_w"), param("fc_b")

    # --- batched h-independent precompute: pre-LSTM MLP + LSTM input projection ---
    x = x_ref[...]                                            # (Tm1*B, obs)
    for w, b in pre_params:
        x = jnp.maximum(
            jnp.dot(x, w, preferred_element_type=jnp.float32) + b, 0.0)
    # NOTE: g-gate columns of w_ih / w_hh / b_lstm are pre-scaled by 2 host-side.
    gin = jnp.dot(x, w_ih, preferred_element_type=jnp.float32) + b_lstm  # (Tm1*B, 4H)

    # --- serial recurrence: one matmul + gate elementwise per step ---
    h = jnp.zeros((B, H), jnp.float32)   # zero initial state (hx=None)
    c = jnp.zeros((B, H), jnp.float32)
    hs = []
    for t in range(Tm1):                 # Tm1 is small & static: full unroll
        gates = gin[t * B:(t + 1) * B, :] + jnp.dot(
            h, w_hh, preferred_element_type=jnp.float32)      # (B, 4H)
        sig = jax.nn.sigmoid(gates)       # single full-width EUP push per step
        i_g = sig[:, 0:H]
        f_g = sig[:, H:2 * H]
        g_g = 2.0 * sig[:, 2 * H:3 * H] - 1.0   # tanh(x) = 2*sigmoid(2x) - 1
        o_g = sig[:, 3 * H:4 * H]
        c = f_g * c + i_g * g_g
        h = o_g * jnp.tanh(c)
        hs.append(h)

    # --- batched post-LSTM head (concat-free) + fcout; single output store ---
    hall = jnp.concatenate(hs, axis=0)                        # (Tm1*B, H)
    y = (jnp.dot(hall, p0_wh, preferred_element_type=jnp.float32)
         + tx_ref[...] * p0_wt + p0_b)
    y = jnp.maximum(y, 0.0)
    for w, b in post_params:
        y = jnp.maximum(
            jnp.dot(y, w, preferred_element_type=jnp.float32) + b, 0.0)
    out = jnp.dot(y, fc_w, preferred_element_type=jnp.float32) + fc_b
    out_ref[...] = out.astype(out_ref.dtype)


def simple_model_forward(series, params):
    """series: (T, B, obs) time-major float32. Returns (T-1, B, num_outputs)."""
    T, B, obs = series.shape
    Tm1 = T - 1
    H = params["w_hh_t"].shape[0]

    pre = params["prelstm"]
    post = params["postlstm"]
    # The PyTorch module concatenates targetx unconditionally, so its first
    # post-LSTM Linear must exist (it has H + 1 inputs).
    assert len(post) >= 1, "SimpleModel requires a non-empty postlstm config"

    # tanh(x) = 2*sigmoid(2x) - 1: scale the g-gate columns by 2 so the kernel
    # needs only one full-width sigmoid per recurrence step.
    gate_scale = jnp.ones((1, 4 * H), jnp.float32).at[:, 2 * H:3 * H].set(2.0)
    w_ih = params["w_ih_t"] * gate_scale
    w_hh = params["w_hh_t"] * gate_scale
    b_lstm = params["b_lstm"] * gate_scale

    # Concat-free post-LSTM head: split the first post-LSTM weight (H+1, D) into
    # the h-part and the targetx-part.
    w0, b0 = post[0]
    w0_h, w0_t = w0[:H], w0[H:H + 1]
    fc_w, fc_b = params["fcout"]
    num_outputs = fc_w.shape[1]

    # Pack every parameter into one slab -> one prologue DMA instead of ~13.
    entries = []
    for idx, (w, b) in enumerate(pre):
        entries.append((f"pre_w_{idx}", w))
        entries.append((f"pre_b_{idx}", b))
    entries += [("w_ih", w_ih), ("w_hh", w_hh), ("b_lstm", b_lstm),
                ("p0_wh", w0_h), ("p0_wt", w0_t), ("p0_b", b0)]
    for idx, (w, b) in enumerate(post[1:], start=1):
        entries.append((f"post_w_{idx}", w))
        entries.append((f"post_b_{idx}", b))
    entries += [("fc_w", fc_w), ("fc_b", fc_b)]
    slab, layout = _pack_param_slab(entries)

    # Wrapper-side layout plumbing: present 2-D t-major/b-minor operands so the
    # kernel's batched matmuls use Tm1*B sublane rows (no in-kernel reshapes).
    x2 = series[:-1].reshape(Tm1 * B, obs)
    tx2 = series[1:, :, :1].reshape(Tm1 * B, 1)

    kernel = functools.partial(
        _fused_forward_kernel, layout=layout, n_pre=len(pre), n_post=len(post),
        Tm1=Tm1, B=B, H=H)

    out2 = pl.pallas_call(
        kernel,
        out_shape=jax.ShapeDtypeStruct((Tm1 * B, num_outputs), jnp.float32),
        grid=(1,),
        in_specs=[
            pl.BlockSpec(x2.shape, lambda i: (0, 0)),
            pl.BlockSpec(tx2.shape, lambda i: (0, 0)),
            pl.BlockSpec(slab.shape, lambda i: (0, 0)),
        ],
        out_specs=pl.BlockSpec((Tm1 * B, num_outputs), lambda i: (0, 0)),
        compiler_params=pltpu.CompilerParams(
            dimension_semantics=("arbitrary",)),
    )(x2, tx2, slab)

    # Contiguous leading-dim split: free reshape back to the module's output shape.
    return out2.reshape(Tm1, B, num_outputs)


# ------------------------------ Parameter creation ------------------------------ #
def _uniform(key, shape, fan_in):
    bound = 1.0 / jnp.sqrt(jnp.float32(fan_in))
    return jax.random.uniform(key, shape, jnp.float32, -bound, bound)


def init_params(key, obs_size, num_outputs, model_config):
    params = {}
    keys = iter(jax.random.split(key, 64))

    # prelstm linears (weights stored transposed: (Din, Dout))
    params["prelstm"] = []
    lstminp = obs_size
    if model_config["prelstm"]:
        dims = [obs_size] + list(model_config["prelstm"])
        lstminp = dims[-1]
        for din, dout in zip(dims[:-1], dims[1:]):
            w = _uniform(next(keys), (din, dout), din)
            b = _uniform(next(keys), (1, dout), din)
            params["prelstm"].append((w, b))

    # LSTM
    H = model_config["lstm_cell_size"]
    params["w_ih_t"] = _uniform(next(keys), (lstminp, 4 * H), H)
    params["w_hh_t"] = _uniform(next(keys), (H, 4 * H), H)
    b_ih = _uniform(next(keys), (1, 4 * H), H)
    b_hh = _uniform(next(keys), (1, 4 * H), H)
    params["b_lstm"] = b_ih + b_hh

    # postlstm linears (first one takes H + 1 inputs due to targetx concat)
    params["postlstm"] = []
    lstmout = H
    if model_config["postlstm"]:
        dims = [H + 1] + list(model_config["postlstm"])
        lstmout = dims[-1]
        for din, dout in zip(dims[:-1], dims[1:]):
            w = _uniform(next(keys), (din, dout), din)
            b = _uniform(next(keys), (1, dout), din)
            params["postlstm"].append((w, b))

    # fcout
    w = _uniform(next(keys), (lstmout, num_outputs), lstmout)
    b = _uniform(next(keys), (1, num_outputs), lstmout)
    params["fcout"] = (w, b)
    return params


# ------------------------------ Pure-JAX reference ------------------------------ #
def _reference_forward(series, params):
    x = series[:-1]
    tx = series[1:, :, :1]
    for w, b in params["prelstm"]:
        x = jax.nn.relu(x @ w + b)
    H = params["w_hh_t"].shape[0]
    B = series.shape[1]
    h = jnp.zeros((B, H), jnp.float32)
    c = jnp.zeros((B, H), jnp.float32)
    hs = []
    for t in range(x.shape[0]):
        g = x[t] @ params["w_ih_t"] + h @ params["w_hh_t"] + params["b_lstm"]
        i_g = jax.nn.sigmoid(g[:, 0:H])
        f_g = jax.nn.sigmoid(g[:, H:2 * H])
        g_g = jnp.tanh(g[:, 2 * H:3 * H])
        o_g = jax.nn.sigmoid(g[:, 3 * H:4 * H])
        c = f_g * c + i_g * g_g
        h = o_g * jnp.tanh(c)
        hs.append(h)
    y = jnp.concatenate([jnp.stack(hs, axis=0), tx], axis=2)
    for w, b in params["postlstm"]:
        y = jax.nn.relu(y @ w + b)
    w, b = params["fcout"]
    return y @ w + b


# ------------------------------------- Main ------------------------------------- #
if __name__ == "__main__":
    obs_size = 8
    num_outputs = 4
    model_config = {
        "prelstm": [32],
        "lstm_cell_size": 32,
        "postlstm": [32],
    }

    key = jax.random.PRNGKey(0)
    k_params, k_data = jax.random.split(key)

    params = init_params(k_params, obs_size, num_outputs, model_config)

    T, B = 9, 2  # forward uses series[:-1] -> 8 timesteps
    series = jax.random.normal(k_data, (T, B, obs_size), dtype=jnp.float32)

    out = jax.jit(simple_model_forward)(series, params)
    out = jax.block_until_ready(out)

    assert out.shape == (T - 1, B, num_outputs), out.shape
    assert bool(jnp.all(jnp.isfinite(out)))

    ref = _reference_forward(series, params)
    assert bool(jnp.allclose(out, ref, atol=1e-2, rtol=1e-2))

    print("KERNEL_OK")
</pallas_src>

<mosaic_0001>
module attributes {stable_mosaic.version = 11 : i64} {
  func.func @_fused_forward_kernel(%arg0: i32, %arg1: memref<16x8xf32, #tpu.memory_space<vmem>>, %arg2: memref<16x1xf32, #tpu.memory_space<vmem>>, %arg3: memref<176x128xf32, #tpu.memory_space<vmem>>, %arg4: memref<16x4xf32, #tpu.memory_space<vmem>>) attributes {dimension_semantics = [#tpu.dimension_semantics<arbitrary>], iteration_bounds = array<i64: 1>, scalar_prefetch = 0 : i64, scratch_operands = 0 : i64, tpu.core_type = #tpu.core_type<tc>, window_params = [{pipeline_mode = #tpu.pipeline_mode<synchronous>, transform_indices = @transform_0, window_bounds = array<i64: 16, 8>}, {pipeline_mode = #tpu.pipeline_mode<synchronous>, transform_indices = @transform_1, window_bounds = array<i64: 16, 1>}, {pipeline_mode = #tpu.pipeline_mode<synchronous>, transform_indices = @transform_2, window_bounds = array<i64: 176, 128>}, {pipeline_mode = #tpu.pipeline_mode<synchronous>, transform_indices = @transform_3, window_bounds = array<i64: 16, 4>}]} {
    %c0 = arith.constant 0 : index
    %c0_0 = arith.constant 0 : index
    %0 = vector.load %arg3[%c0, %c0_0] : memref<176x128xf32, #tpu.memory_space<vmem>>, vector<8x32xf32>
    %c8 = arith.constant 8 : index
    %c0_1 = arith.constant 0 : index
    %1 = vector.load %arg3[%c8, %c0_1] : memref<176x128xf32, #tpu.memory_space<vmem>>, vector<1x32xf32>
    %c16 = arith.constant 16 : index
    %c0_2 = arith.constant 0 : index
    %2 = vector.load %arg3[%c16, %c0_2] : memref<176x128xf32, #tpu.memory_space<vmem>>, vector<32x128xf32>
    %c48 = arith.constant 48 : index
    %c0_3 = arith.constant 0 : index
    %3 = vector.load %arg3[%c48, %c0_3] : memref<176x128xf32, #tpu.memory_space<vmem>>, vector<32x128xf32>
    %c80 = arith.constant 80 : index
    %c0_4 = arith.constant 0 : index
    %4 = vector.load %arg3[%c80, %c0_4] : memref<176x128xf32, #tpu.memory_space<vmem>>, vector<1x128xf32>
    %c88 = arith.constant 88 : index
    %c0_5 = arith.constant 0 : index
    %5 = vector.load %arg3[%c88, %c0_5] : memref<176x128xf32, #tpu.memory_space<vmem>>, vector<32x32xf32>
    %c120 = arith.constant 120 : index
    %c0_6 = arith.constant 0 : index
    %6 = vector.load %arg3[%c120, %c0_6] : memref<176x128xf32, #tpu.memory_space<vmem>>, vector<1x32xf32>
    %c128 = arith.constant 128 : index
    %c0_7 = arith.constant 0 : index
    %7 = vector.load %arg3[%c128, %c0_7] : memref<176x128xf32, #tpu.memory_space<vmem>>, vector<1x32xf32>
    %c136 = arith.constant 136 : index
    %c0_8 = arith.constant 0 : index
    %8 = vector.load %arg3[%c136, %c0_8] : memref<176x128xf32, #tpu.memory_space<vmem>>, vector<32x4xf32>
    %c168 = arith.constant 168 : index
    %c0_9 = arith.constant 0 : index
    %9 = vector.load %arg3[%c168, %c0_9] : memref<176x128xf32, #tpu.memory_space<vmem>>, vector<1x4xf32>
    %c0_10 = arith.constant 0 : index
    %c0_11 = arith.constant 0 : index
    %10 = vector.load %arg1[%c0_10, %c0_11] : memref<16x8xf32, #tpu.memory_space<vmem>>, vector<16x8xf32>
    %cst = arith.constant dense<0.000000e+00> : vector<16x32xf32>
    %11 = tpu.matmul %10, %0, %cst {dimension_numbers = #tpu.dot_dimension_numbers<[1], [0], [0], [1], [0, 0, 1, 1], [], []>} : vector<16x8xf32>, vector<8x32xf32>, vector<16x32xf32> -> vector<16x32xf32>
    %12 = vector.broadcast %1 : vector<1x32xf32> to vector<16x32xf32>
    %13 = arith.addf %11, %12 : vector<16x32xf32>
    %cst_12 = arith.constant 0.000000e+00 : f32
    %14 = vector.broadcast %cst_12 : f32 to vector<16x32xf32>
    %15 = arith.maximumf %13, %14 : vector<16x32xf32>
    %cst_13 = arith.constant dense<0.000000e+00> : vector<16x128xf32>
    %16 = tpu.matmul %15, %2, %cst_13 {dimension_numbers = #tpu.dot_dimension_numbers<[1], [0], [0], [1], [0, 0, 1, 1], [], []>} : vector<16x32xf32>, vector<32x128xf32>, vector<16x128xf32> -> vector<16x128xf32>
    %17 = vector.broadcast %4 : vector<1x128xf32> to vector<16x128xf32>
    %18 = arith.addf %16, %17 : vector<16x128xf32>
    %cst_14 = arith.constant 0.000000e+00 : f32
    %19 = vector.broadcast %cst_14 : f32 to vector<2x32xf32>
    %cst_15 = arith.constant 0.000000e+00 : f32
    %20 = vector.broadcast %cst_15 : f32 to vector<2x32xf32>
    %21 = vector.extract_strided_slice %18 {offsets = [0, 0], sizes = [2, 128], strides = [1, 1]} : vector<16x128xf32> to vector<2x128xf32>
    %cst_16 = arith.constant dense<0.000000e+00> : vector<2x128xf32>
    %22 = tpu.matmul %19, %3, %cst_16 {dimension_numbers = #tpu.dot_dimension_numbers<[1], [0], [0], [1], [0, 0, 1, 1], [], []>} : vector<2x32xf32>, vector<32x128xf32>, vector<2x128xf32> -> vector<2x128xf32>
    %23 = arith.addf %21, %22 : vector<2x128xf32>
    %24 = arith.negf %23 : vector<2x128xf32>
    %25 = math.exp %24 : vector<2x128xf32>
    %cst_17 = arith.constant 1.000000e+00 : f32
    %26 = vector.broadcast %cst_17 : f32 to vector<2x128xf32>
    %27 = arith.addf %26, %25 : vector<2x128xf32>
    %28 = arith.divf %26, %27 : vector<2x128xf32>
    %29 = vector.extract_strided_slice %28 {offsets = [0, 0], sizes = [2, 32], strides = [1, 1]} : vector<2x128xf32> to vector<2x32xf32>
    %30 = vector.extract_strided_slice %28 {offsets = [0, 32], sizes = [2, 32], strides = [1, 1]} : vector<2x128xf32> to vector<2x32xf32>
    %31 = vector.extract_strided_slice %28 {offsets = [0, 64], sizes = [2, 32], strides = [1, 1]} : vector<2x128xf32> to vector<2x32xf32>
    %cst_18 = arith.constant 2.000000e+00 : f32
    %32 = vector.broadcast %cst_18 : f32 to vector<2x32xf32>
    %33 = arith.mulf %32, %31 : vector<2x32xf32>
    %cst_19 = arith.constant 1.000000e+00 : f32
    %34 = vector.broadcast %cst_19 : f32 to vector<2x32xf32>
    %35 = arith.subf %33, %34 : vector<2x32xf32>
    %36 = vector.extract_strided_slice %28 {offsets = [0, 96], sizes = [2, 32], strides = [1, 1]} : vector<2x128xf32> to vector<2x32xf32>
    %37 = arith.mulf %30, %20 : vector<2x32xf32>
    %38 = arith.mulf %29, %35 : vector<2x32xf32>
    %39 = arith.addf %37, %38 : vector<2x32xf32>
    %40 = math.tanh %39 : vector<2x32xf32>
    %41 = arith.mulf %36, %40 : vector<2x32xf32>
    %42 = vector.extract_strided_slice %18 {offsets = [2, 0], sizes = [2, 128], strides = [1, 1]} : vector<16x128xf32> to vector<2x128xf32>
    %cst_20 = arith.constant dense<0.000000e+00> : vector<2x128xf32>
    %43 = tpu.matmul %41, %3, %cst_20 {dimension_numbers = #tpu.dot_dimension_numbers<[1], [0], [0], [1], [0, 0, 1, 1], [], []>} : vector<2x32xf32>, vector<32x128xf32>, vector<2x128xf32> -> vector<2x128xf32>
    %44 = arith.addf %42, %43 : vector<2x128xf32>
    %45 = arith.negf %44 : vector<2x128xf32>
    %46 = math.exp %45 : vector<2x128xf32>
    %cst_21 = arith.constant 1.000000e+00 : f32
    %47 = vector.broadcast %cst_21 : f32 to vector<2x128xf32>
    %48 = arith.addf %47, %46 : vector<2x128xf32>
    %49 = arith.divf %47, %48 : vector<2x128xf32>
    %50 = vector.extract_strided_slice %49 {offsets = [0, 0], sizes = [2, 32], strides = [1, 1]} : vector<2x128xf32> to vector<2x32xf32>
    %51 = vector.extract_strided_slice %49 {offsets = [0, 32], sizes = [2, 32], strides = [1, 1]} : vector<2x128xf32> to vector<2x32xf32>
    %52 = vector.extract_strided_slice %49 {offsets = [0, 64], sizes = [2, 32], strides = [1, 1]} : vector<2x128xf32> to vector<2x32xf32>
    %cst_22 = arith.constant 2.000000e+00 : f32
    %53 = vector.broadcast %cst_22 : f32 to vector<2x32xf32>
    %54 = arith.mulf %53, %52 : vector<2x32xf32>
    %cst_23 = arith.constant 1.000000e+00 : f32
    %55 = vector.broadcast %cst_23 : f32 to vector<2x32xf32>
    %56 = arith.subf %54, %55 : vector<2x32xf32>
    %57 = vector.extract_strided_slice %49 {offsets = [0, 96], sizes = [2, 32], strides = [1, 1]} : vector<2x128xf32> to vector<2x32xf32>
    %58 = arith.mulf %51, %39 : vector<2x32xf32>
    %59 = arith.mulf %50, %56 : vector<2x32xf32>
    %60 = arith.addf %58, %59 : vector<2x32xf32>
    %61 = math.tanh %60 : vector<2x32xf32>
    %62 = arith.mulf %57, %61 : vector<2x32xf32>
    %63 = vector.extract_strided_slice %18 {offsets = [4, 0], sizes = [2, 128], strides = [1, 1]} : vector<16x128xf32> to vector<2x128xf32>
    %cst_24 = arith.constant dense<0.000000e+00> : vector<2x128xf32>
    %64 = tpu.matmul %62, %3, %cst_24 {dimension_numbers = #tpu.dot_dimension_numbers<[1], [0], [0], [1], [0, 0, 1, 1], [], []>} : vector<2x32xf32>, vector<32x128xf32>, vector<2x128xf32> -> vector<2x128xf32>
    %65 = arith.addf %63, %64 : vector<2x128xf32>
    %66 = arith.negf %65 : vector<2x128xf32>
    %67 = math.exp %66 : vector<2x128xf32>
    %cst_25 = arith.constant 1.000000e+00 : f32
    %68 = vector.broadcast %cst_25 : f32 to vector<2x128xf32>
    %69 = arith.addf %68, %67 : vector<2x128xf32>
    %70 = arith.divf %68, %69 : vector<2x128xf32>
    %71 = vector.extract_strided_slice %70 {offsets = [0, 0], sizes = [2, 32], strides = [1, 1]} : vector<2x128xf32> to vector<2x32xf32>
    %72 = vector.extract_strided_slice %70 {offsets = [0, 32], sizes = [2, 32], strides = [1, 1]} : vector<2x128xf32> to vector<2x32xf32>
    %73 = vector.extract_strided_slice %70 {offsets = [0, 64], sizes = [2, 32], strides = [1, 1]} : vector<2x128xf32> to vector<2x32xf32>
    %cst_26 = arith.constant 2.000000e+00 : f32
    %74 = vector.broadcast %cst_26 : f32 to vector<2x32xf32>
    %75 = arith.mulf %74, %73 : vector<2x32xf32>
    %cst_27 = arith.constant 1.000000e+00 : f32
    %76 = vector.broadcast %cst_27 : f32 to vector<2x32xf32>
    %77 = arith.subf %75, %76 : vector<2x32xf32>
    %78 = vector.extract_strided_slice %70 {offsets = [0, 96], sizes = [2, 32], strides = [1, 1]} : vector<2x128xf32> to vector<2x32xf32>
    %79 = arith.mulf %72, %60 : vector<2x32xf32>
    %80 = arith.mulf %71, %77 : vector<2x32xf32>
    %81 = arith.addf %79, %80 : vector<2x32xf32>
    %82 = math.tanh %81 : vector<2x32xf32>
    %83 = arith.mulf %78, %82 : vector<2x32xf32>
    %84 = vector.extract_strided_slice %18 {offsets = [6, 0], sizes = [2, 128], strides = [1, 1]} : vector<16x128xf32> to vector<2x128xf32>
    %cst_28 = arith.constant dense<0.000000e+00> : vector<2x128xf32>
    %85 = tpu.matmul %83, %3, %cst_28 {dimension_numbers = #tpu.dot_dimension_numbers<[1], [0], [0], [1], [0, 0, 1, 1], [], []>} : vector<2x32xf32>, vector<32x128xf32>, vector<2x128xf32> -> vector<2x128xf32>
    %86 = arith.addf %84, %85 : vector<2x128xf32>
    %87 = arith.negf %86 : vector<2x128xf32>
    %88 = math.exp %87 : vector<2x128xf32>
    %cst_29 = arith.constant 1.000000e+00 : f32
    %89 = vector.broadcast %cst_29 : f32 to vector<2x128xf32>
    %90 = arith.addf %89, %88 : vector<2x128xf32>
    %91 = arith.divf %89, %90 : vector<2x128xf32>
    %92 = vector.extract_strided_slice %91 {offsets = [0, 0], sizes = [2, 32], strides = [1, 1]} : vector<2x128xf32> to vector<2x32xf32>
    %93 = vector.extract_strided_slice %91 {offsets = [0, 32], sizes = [2, 32], strides = [1, 1]} : vector<2x128xf32> to vector<2x32xf32>
    %94 = vector.extract_strided_slice %91 {offsets = [0, 64], sizes = [2, 32], strides = [1, 1]} : vector<2x128xf32> to vector<2x32xf32>
    %cst_30 = arith.constant 2.000000e+00 : f32
    %95 = vector.broadcast %cst_30 : f32 to vector<2x32xf32>
    %96 = arith.mulf %95, %94 : vector<2x32xf32>
    %cst_31 = arith.constant 1.000000e+00 : f32
    %97 = vector.broadcast %cst_31 : f32 to vector<2x32xf32>
    %98 = arith.subf %96, %97 : vector<2x32xf32>
    %99 = vector.extract_strided_slice %91 {offsets = [0, 96], sizes = [2, 32], strides = [1, 1]} : vector<2x128xf32> to vector<2x32xf32>
    %100 = arith.mulf %93, %81 : vector<2x32xf32>
    %101 = arith.mulf %92, %98 : vector<2x32xf32>
    %102 = arith.addf %100, %101 : vector<2x32xf32>
    %103 = math.tanh %102 : vector<2x32xf32>
    %104 = arith.mulf %99, %103 : vector<2x32xf32>
    %105 = vector.extract_strided_slice %18 {offsets = [8, 0], sizes = [2, 128], strides = [1, 1]} : vector<16x128xf32> to vector<2x128xf32>
    %cst_32 = arith.constant dense<0.000000e+00> : vector<2x128xf32>
    %106 = tpu.matmul %104, %3, %cst_32 {dimension_numbers = #tpu.dot_dimension_numbers<[1], [0], [0], [1], [0, 0, 1, 1], [], []>} : vector<2x32xf32>, vector<32x128xf32>, vector<2x128xf32> -> vector<2x128xf32>
    %107 = arith.addf %105, %106 : vector<2x128xf32>
    %108 = arith.negf %107 : vector<2x128xf32>
    %109 = math.exp %108 : vector<2x128xf32>
    %cst_33 = arith.constant 1.000000e+00 : f32
    %110 = vector.broadcast %cst_33 : f32 to vector<2x128xf32>
    %111 = arith.addf %110, %109 : vector<2x128xf32>
    %112 = arith.divf %110, %111 : vector<2x128xf32>
    %113 = vector.extract_strided_slice %112 {offsets = [0, 0], sizes = [2, 32], strides = [1, 1]} : vector<2x128xf32> to vector<2x32xf32>
    %114 = vector.extract_strided_slice %112 {offsets = [0, 32], sizes = [2, 32], strides = [1, 1]} : vector<2x128xf32> to vector<2x32xf32>
    %115 = vector.extract_strided_slice %112 {offsets = [0, 64], sizes = [2, 32], strides = [1, 1]} : vector<2x128xf32> to vector<2x32xf32>
    %cst_34 = arith.constant 2.000000e+00 : f32
    %116 = vector.broadcast %cst_34 : f32 to vector<2x32xf32>
    %117 = arith.mulf %116, %115 : vector<2x32xf32>
    %cst_35 = arith.constant 1.000000e+00 : f32
    %118 = vector.broadcast %cst_35 : f32 to vector<2x32xf32>
    %119 = arith.subf %117, %118 : vector<2x32xf32>
    %120 = vector.extract_strided_slice %112 {offsets = [0, 96], sizes = [2, 32], strides = [1, 1]} : vector<2x128xf32> to vector<2x32xf32>
    %121 = arith.mulf %114, %102 : vector<2x32xf32>
    %122 = arith.mulf %113, %119 : vector<2x32xf32>
    %123 = arith.addf %121, %122 : vector<2x32xf32>
    %124 = math.tanh %123 : vector<2x32xf32>
    %125 = arith.mulf %120, %124 : vector<2x32xf32>
    %126 = vector.extract_strided_slice %18 {offsets = [10, 0], sizes = [2, 128], strides = [1, 1]} : vector<16x128xf32> to vector<2x128xf32>
    %cst_36 = arith.constant dense<0.000000e+00> : vector<2x128xf32>
    %127 = tpu.matmul %125, %3, %cst_36 {dimension_numbers = #tpu.dot_dimension_numbers<[1], [0], [0], [1], [0, 0, 1, 1], [], []>} : vector<2x32xf32>, vector<32x128xf32>, vector<2x128xf32> -> vector<2x128xf32>
    %128 = arith.addf %126, %127 : vector<2x128xf32>
    %129 = arith.negf %128 : vector<2x128xf32>
    %130 = math.exp %129 : vector<2x128xf32>
    %cst_37 = arith.constant 1.000000e+00 : f32
    %131 = vector.broadcast %cst_37 : f32 to vector<2x128xf32>
    %132 = arith.addf %131, %130 : vector<2x128xf32>
    %133 = arith.divf %131, %132 : vector<2x128xf32>
    %134 = vector.extract_strided_slice %133 {offsets = [0, 0], sizes = [2, 32], strides = [1, 1]} : vector<2x128xf32> to vector<2x32xf32>
    %135 = vector.extract_strided_slice %133 {offsets = [0, 32], sizes = [2, 32], strides = [1, 1]} : vector<2x128xf32> to vector<2x32xf32>
    %136 = vector.extract_strided_slice %133 {offsets = [0, 64], sizes = [2, 32], strides = [1, 1]} : vector<2x128xf32> to vector<2x32xf32>
    %cst_38 = arith.constant 2.000000e+00 : f32
    %137 = vector.broadcast %cst_38 : f32 to vector<2x32xf32>
    %138 = arith.mulf %137, %136 : vector<2x32xf32>
    %cst_39 = arith.constant 1.000000e+00 : f32
    %139 = vector.broadcast %cst_39 : f32 to vector<2x32xf32>
    %140 = arith.subf %138, %139 : vector<2x32xf32>
    %141 = vector.extract_strided_slice %133 {offsets = [0, 96], sizes = [2, 32], strides = [1, 1]} : vector<2x128xf32> to vector<2x32xf32>
    %142 = arith.mulf %135, %123 : vector<2x32xf32>
    %143 = arith.mulf %134, %140 : vector<2x32xf32>
    %144 = arith.addf %142, %143 : vector<2x32xf32>
    %145 = math.tanh %144 : vector<2x32xf32>
    %146 = arith.mulf %141, %145 : vector<2x32xf32>
    %147 = vector.extract_strided_slice %18 {offsets = [12, 0], sizes = [2, 128], strides = [1, 1]} : vector<16x128xf32> to vector<2x128xf32>
    %cst_40 = arith.constant dense<0.000000e+00> : vector<2x128xf32>
    %148 = tpu.matmul %146, %3, %cst_40 {dimension_numbers = #tpu.dot_dimension_numbers<[1], [0], [0], [1], [0, 0, 1, 1], [], []>} : vector<2x32xf32>, vector<32x128xf32>, vector<2x128xf32> -> vector<2x128xf32>
    %149 = arith.addf %147, %148 : vector<2x128xf32>
    %150 = arith.negf %149 : vector<2x128xf32>
    %151 = math.exp %150 : vector<2x128xf32>
    %cst_41 = arith.constant 1.000000e+00 : f32
    %152 = vector.broadcast %cst_41 : f32 to vector<2x128xf32>
    %153 = arith.addf %152, %151 : vector<2x128xf32>
    %154 = arith.divf %152, %153 : vector<2x128xf32>
    %155 = vector.extract_strided_slice %154 {offsets = [0, 0], sizes = [2, 32], strides = [1, 1]} : vector<2x128xf32> to vector<2x32xf32>
    %156 = vector.extract_strided_slice %154 {offsets = [0, 32], sizes = [2, 32], strides = [1, 1]} : vector<2x128xf32> to vector<2x32xf32>
    %157 = vector.extract_strided_slice %154 {offsets = [0, 64], sizes = [2, 32], strides = [1, 1]} : vector<2x128xf32> to vector<2x32xf32>
    %cst_42 = arith.constant 2.000000e+00 : f32
    %158 = vector.broadcast %cst_42 : f32 to vector<2x32xf32>
    %159 = arith.mulf %158, %157 : vector<2x32xf32>
    %cst_43 = arith.constant 1.000000e+00 : f32
    %160 = vector.broadcast %cst_43 : f32 to vector<2x32xf32>
    %161 = arith.subf %159, %160 : vector<2x32xf32>
    %162 = vector.extract_strided_slice %154 {offsets = [0, 96], sizes = [2, 32], strides = [1, 1]} : vector<2x128xf32> to vector<2x32xf32>
    %163 = arith.mulf %156, %144 : vector<2x32xf32>
    %164 = arith.mulf %155, %161 : vector<2x32xf32>
    %165 = arith.addf %163, %164 : vector<2x32xf32>
    %166 = math.tanh %165 : vector<2x32xf32>
    %167 = arith.mulf %162, %166 : vector<2x32xf32>
    %168 = vector.extract_strided_slice %18 {offsets = [14, 0], sizes = [2, 128], strides = [1, 1]} : vector<16x128xf32> to vector<2x128xf32>
    %cst_44 = arith.constant dense<0.000000e+00> : vector<2x128xf32>
    %169 = tpu.matmul %167, %3, %cst_44 {dimension_numbers = #tpu.dot_dimension_numbers<[1], [0], [0], [1], [0, 0, 1, 1], [], []>} : vector<2x32xf32>, vector<32x128xf32>, vector<2x128xf32> -> vector<2x128xf32>
    %170 = arith.addf %168, %169 : vector<2x128xf32>
    %171 = arith.negf %170 : vector<2x128xf32>
    %172 = math.exp %171 : vector<2x128xf32>
    %cst_45 = arith.constant 1.000000e+00 : f32
    %173 = vector.broadcast %cst_45 : f32 to vector<2x128xf32>
    %174 = arith.addf %173, %172 : vector<2x128xf32>
    %175 = arith.divf %173, %174 : vector<2x128xf32>
    %176 = vector.extract_strided_slice %175 {offsets = [0, 0], sizes = [2, 32], strides = [1, 1]} : vector<2x128xf32> to vector<2x32xf32>
    %177 = vector.extract_strided_slice %175 {offsets = [0, 32], sizes = [2, 32], strides = [1, 1]} : vector<2x128xf32> to vector<2x32xf32>
    %178 = vector.extract_strided_slice %175 {offsets = [0, 64], sizes = [2, 32], strides = [1, 1]} : vector<2x128xf32> to vector<2x32xf32>
    %cst_46 = arith.constant 2.000000e+00 : f32
    %179 = vector.broadcast %cst_46 : f32 to vector<2x32xf32>
    %180 = arith.mulf %179, %178 : vector<2x32xf32>
    %cst_47 = arith.constant 1.000000e+00 : f32
    %181 = vector.broadcast %cst_47 : f32 to vector<2x32xf32>
    %182 = arith.subf %180, %181 : vector<2x32xf32>
    %183 = vector.extract_strided_slice %175 {offsets = [0, 96], sizes = [2, 32], strides = [1, 1]} : vector<2x128xf32> to vector<2x32xf32>
    %184 = arith.mulf %177, %165 : vector<2x32xf32>
    %185 = arith.mulf %176, %182 : vector<2x32xf32>
    %186 = arith.addf %184, %185 : vector<2x32xf32>
    %187 = math.tanh %186 : vector<2x32xf32>
    %188 = arith.mulf %183, %187 : vector<2x32xf32>
    %189 = tpu.concatenate %41, %62, %83, %104, %125, %146, %167, %188 in 0 : vector<2x32xf32>, vector<2x32xf32>, vector<2x32xf32>, vector<2x32xf32>, vector<2x32xf32>, vector<2x32xf32>, vector<2x32xf32>, vector<2x32xf32> -> vector<16x32xf32>
    %cst_48 = arith.constant dense<0.000000e+00> : vector<16x32xf32>
    %190 = tpu.matmul %189, %5, %cst_48 {dimension_numbers = #tpu.dot_dimension_numbers<[1], [0], [0], [1], [0, 0, 1, 1], [], []>} : vector<16x32xf32>, vector<32x32xf32>, vector<16x32xf32> -> vector<16x32xf32>
    %c0_49 = arith.constant 0 : index
    %c0_50 = arith.constant 0 : index
    %191 = vector.load %arg2[%c0_49, %c0_50] : memref<16x1xf32, #tpu.memory_space<vmem>>, vector<16x1xf32>
    %192 = vector.broadcast %191 : vector<16x1xf32> to vector<16x32xf32>
    %193 = vector.broadcast %6 : vector<1x32xf32> to vector<16x32xf32>
    %194 = arith.mulf %192, %193 : vector<16x32xf32>
    %195 = arith.addf %190, %194 : vector<16x32xf32>
    %196 = vector.broadcast %7 : vector<1x32xf32> to vector<16x32xf32>
    %197 = arith.addf %195, %196 : vector<16x32xf32>
    %cst_51 = arith.constant 0.000000e+00 : f32
    %198 = vector.broadcast %cst_51 : f32 to vector<16x32xf32>
    %199 = arith.maximumf %197, %198 : vector<16x32xf32>
    %cst_52 = arith.constant dense<0.000000e+00> : vector<16x4xf32>
    %200 = tpu.matmul %199, %8, %cst_52 {dimension_numbers = #tpu.dot_dimension_numbers<[1], [0], [0], [1], [0, 0, 1, 1], [], []>} : vector<16x32xf32>, vector<32x4xf32>, vector<16x4xf32> -> vector<16x4xf32>
    %201 = vector.broadcast %9 : vector<1x4xf32> to vector<16x4xf32>
    %202 = arith.addf %200, %201 : vector<16x4xf32>
    %c0_53 = arith.constant 0 : index
    %c0_54 = arith.constant 0 : index
    %203 = vector.load %arg4[%c0_53, %c0_54] : memref<16x4xf32, #tpu.memory_space<vmem>>, vector<16x4xf32>
    tpu.vector_store %arg4[%c0_53, %c0_54], %202 {strides = array<i32>} : memref<16x4xf32, #tpu.memory_space<vmem>>, vector<16x4xf32>,
    return
  }
  func.func @transform_0(%arg0: i32) -> (i32, i32) {
    %c0_i32 = arith.constant 0 : i32
    %c0_i32_0 = arith.constant 0 : i32
    %c0_i32_1 = arith.constant 0 : i32
    return %c0_i32, %c0_i32_0 : i32, i32
  }
  func.func @transform_1(%arg0: i32) -> (i32, i32) {
    %c0_i32 = arith.constant 0 : i32
    %c0_i32_0 = arith.constant 0 : i32
    %c0_i32_1 = arith.constant 0 : i32
    return %c0_i32, %c0_i32_0 : i32, i32
  }
  func.func @transform_2(%arg0: i32) -> (i32, i32) {
    %c0_i32 = arith.constant 0 : i32
    %c0_i32_0 = arith.constant 0 : i32
    %c0_i32_1 = arith.constant 0 : i32
    return %c0_i32, %c0_i32_0 : i32, i32
  }
  func.func @transform_3(%arg0: i32) -> (i32, i32) {
    %c0_i32 = arith.constant 0 : i32
    %c0_i32_0 = arith.constant 0 : i32
    %c0_i32_1 = arith.constant 0 : i32
    return %c0_i32, %c0_i32_0 : i32, i32
  }
}

</mosaic_0001>

<llo_original>
// kernel: simple_model_forward.1
$region0: #{simple_model_forward.1}
  #allocation0 [shape = 'u32[]', space=smem, size = 0x4, offset = 0x4, fixed_abs, tag = 'smem constant byte address 0x4 - core index']
  #allocation1 [shape = 'u32[72,128]{1,0:T(1,128)}', space=vmem, size = 0x9000, scoped, tag = 'internal scratch']
  %s0 = inlined_call_operand.vmem [shape: f32[16,8], index: 0, kind: input, shape index: {}]
  %s1 = inlined_call_operand.vmem [shape: f32[16,1], index: 1, kind: input, shape index: {}]
  %s2 = inlined_call_operand.vmem [shape: f32[176,128], index: 2, kind: input, shape index: {}]
  %s3 = inlined_call_operand.vmem [shape: f32[16,4], index: 3, kind: output, shape index: {}]
  %s4 = sld [smem:[#allocation0]]
  $region22: #{simple_model_forward.1} parent=0
    _
  %s6 = ssub.s32 1, %s4
  %s7 = scalar_select 0, %s6, %s4
  // Predicated region
  $region2: #{simple_model_forward.1} parent=0 // pred_check
    _
  $region3: #{simple_model_forward.1} parent=0 // pred_check_branch
    %9 = sbr.rel (0) target = $region5
  $region4: #{simple_model_forward.1} parent=0 // pred_region
    _
  $region5: #{simple_model_forward.1} parent=0 // pred_fallthru
    _
  // Predicated region
  $region6: #{simple_model_forward.1} parent=0 // pred_check
    _
  $region7: #{simple_model_forward.1} parent=0 // pred_check_branch
    %11 = sbr.rel (0) target = $region9
  $region8: #{simple_model_forward.1} parent=0 // pred_region
    _
  $region9: #{simple_model_forward.1} parent=0 // pred_fallthru
    _
  // Predicated region
  $region10: #{simple_model_forward.1} parent=0 // pred_check
    _
  $region11: #{simple_model_forward.1} parent=0 // pred_check_branch
    %13 = sbr.rel (0) target = $region13
  $region12: #{simple_model_forward.1} parent=0 // pred_region
    _
  $region13: #{simple_model_forward.1} parent=0 // pred_fallthru
    _
  %v14 = vld [vmem:[%s2] sm:$0xff]
  %v15 = vld [vmem:[%s2 + $0x8] sm:$0x1]
  %v16 = vld [vmem:[%s2 + $0x10] sm:$0xff]
  %v17 = vld [vmem:[%s2 + $0x18] sm:$0xff]
  %v18 = vld [vmem:[%s2 + $0x20] sm:$0xff]
  %v19 = vld [vmem:[%s2 + $0x28] sm:$0xff]
  %v20 = vld [vmem:[%s2 + $0x30] sm:$0xff]
  %v21 = vld [vmem:[%s2 + $0x38] sm:$0xff]
  %v22 = vld [vmem:[%s2 + $0x40] sm:$0xff]
  %v23 = vld [vmem:[%s2 + $0x48] sm:$0xff]
  %v24 = vld [vmem:[%s2 + $0x50] sm:$0x1]
  %v25 = vld [vmem:[%s2 + $0x58] sm:$0xff]
  %v26 = vld [vmem:[%s2 + $0x60] sm:$0xff]
  %v27 = vld [vmem:[%s2 + $0x68] sm:$0xff]
  %v28 = vld [vmem:[%s2 + $0x70] sm:$0xff]
  %v29 = vld [vmem:[%s2 + $0x78] sm:$0x1]
  %v30 = vld [vmem:[%s2 + $0x80] sm:$0x1]
  %v31 = vld [vmem:[%s2 + $0x88] sm:$0xff]
  %v32 = vld [vmem:[%s2 + $0x90] sm:$0xff]
  %v33 = vld [vmem:[%s2 + $0x98] sm:$0xff]
  %v34 = vld [vmem:[%s2 + $0xa0] sm:$0xff]
  %v35 = vld [vmem:[%s2 + $0xa8] sm:$0x1]
  %v36 = vld [vmem:[%s0] sm:$0xff]
  %v37 = vld [vmem:[%s0 + $0x8] sm:$0xff]
  %v38 = vperm.slane %v15, 0
  %vm39 = vcmask 64512
  %v41 = vsel %vm39, %v36, 0
  %v44 = vsel %vm39, %v37, 0
  %46 = vmatpush.msra.mxu0 0.0
  %47 = vmatpush.msra.mxu0 0.0
  %48 = vmatpush.msra.mxu0 0.0
  %49 = vmatpush.msra.mxu0 0.0
  %50 = vmatpush.msra.mxu0 0.0
  %51 = vmatpush.msra.mxu0 0.0
  %52 = vmatpush.msra.mxu0 0.0
  %53 = vmatpush.msra.mxu0 0.0
  %54 = vmatpush.msra.mxu0 0.0
  %55 = vmatpush.msra.mxu0 0.0
  %56 = vmatpush.msra.mxu0 0.0
  %57 = vmatpush.msra.mxu0 0.0
  %58 = vmatpush.msra.mxu0 0.0
  %59 = vmatpush.msra.mxu0 0.0
  %60 = vmatpush.msra.mxu0 0.0
  %61 = vmatpush.msra.mxu0 %v14
  %62 = vmatmul.f32.gmra.mxu0 %v41
  %v63 = vpop.f32.mrf.mxu0
  %v64 = vadd.f32 %v38, %v63
  %65 = vmatmul.f32.gmra.mxu0 %v44
  %v66 = vpop.f32.mrf.mxu0
  %v67 = vadd.f32 %v38, %v66
  %68 = vdwg.mxu0
  %v69 = vmax.f32 %v64, 0.0
  %v70 = vmax.f32 %v67, 0.0
  %v71 = vperm.slane %v24, 0
  %vm72 = vcmask 261120
  %v74 = vsel %vm72, %v69, 0
  %v77 = vsel %vm72, %v70, 0
  %79 = vmatpush.msra.mxu0 0.0
  %80 = vmatpush.msra.mxu0 0.0
  %81 = vmatpush.msra.mxu0 0.0
  %82 = vmatpush.msra.mxu0 0.0
  %83 = vmatpush.msra.mxu0 0.0
  %84 = vmatpush.msra.mxu0 0.0
  %85 = vmatpush.msra.mxu0 0.0
  %86 = vmatpush.msra.mxu0 0.0
  %87 = vmatpush.msra.mxu0 0.0
  %88 = vmatpush.msra.mxu0 0.0
  %89 = vmatpush.msra.mxu0 0.0
  %90 = vmatpush.msra.mxu0 0.0
  %91 = vmatpush.msra.mxu0 %v19
  %92 = vmatpush.msra.mxu0 %v18
  %93 = vmatpush.msra.mxu0 %v17
  %94 = vmatpush.msra.mxu0 %v16
  %95 = vmatmul.f32.gmra.mxu0 %v74
  %v96 = vpop.f32.mrf.mxu0
  %v97 = vadd.f32 %v71, %v96
  %98 = vmatmul.f32.gmra.mxu0 %v77
  %v99 = vpop.f32.mrf.mxu0
  %v100 = vadd.f32 %v71, %v99
  %101 = vdwg.mxu0
  %v103 = vsel %vm72, 0.0, 0
  %105 = vmatpush.msra.mxu0 0.0
  %106 = vmatpush.msra.mxu0 0.0
  %107 = vmatpush.msra.mxu0 0.0
  %108 = vmatpush.msra.mxu0 0.0
  %109 = vmatpush.msra.mxu0 0.0
  %110 = vmatpush.msra.mxu0 0.0
  %111 = vmatpush.msra.mxu0 0.0
  %112 = vmatpush.msra.mxu0 0.0
  %113 = vmatpush.msra.mxu0 0.0
  %114 = vmatpush.msra.mxu0 0.0
  %115 = vmatpush.msra.mxu0 0.0
  %116 = vmatpush.msra.mxu0 0.0
  %117 = vmatpush.msra.mxu0 %v23
  %118 = vmatpush.msra.mxu0 %v22
  %119 = vmatpush.msra.mxu0 %v21
  %120 = vmatpush.msra.mxu0 %v20
  %121 = vmatmul.f32.gmra.mxu0 %v103
  %v122 = vpop.f32.mrf.mxu0
  %v123 = vadd.f32 0.0, %v122
  %124 = vdwg.mxu0
  %v125 = vadd.f32 %v97, %v123
  %v126 = vxor.u32 %v125, 2147483648
  %v127 = vmul.f32 %v126, 1.442695
  %v128 = vpow.pop %v127
  %v129 = vadd.f32 %v128, 1.0
  %v130 = vrcp.pop %v129
  %v131 = vmul.f32 %v129, %v130
  %v132 = vsub.f32 1.0, %v131
  %v133 = vmul.f32 %v130, %v132
  %v134 = vadd.f32 %v130, %v133
  %vm135 = vweird.f32 %v129
  %vm136 = vweird.f32 %v130
  %vm137 = vmor %vm135, %vm136
  %v138 = vsel %vm137, %v130, %v134
  %v139 = vand.u32 2147483647, %v129
  %vm140 = vcmp.eq.f32.partialorder %v139, 8.507059e+37
  %v141 = vand.u32 %v129, 2147483648
  %v142 = vor.u32 1.1754944e-38, %v141
  %v143 = vsel %vm140, %v142, %v138
  %v144 = vmul.f32 1.0, %v143
  %v145 = vmul.f32 %v144, 2.0
  %v146 = vsub.f32 %v145, 1.0
  %v147 = vmul.f32 %v144, 0.0
  %149 = vrot.lane.b32.xlu0 %v146, 64
  %v150 = vpop.permute.xlu0 %149
  %v152 = vmul.f32 %v144, %v150
  %154 = vrot.lane.b32.xlu0 %v152, 32
  %v155 = vpop.permute.xlu0 %154
  %v157 = vadd.f32 %v147, %v155
  %v158 = vtanh.pop %v157
  %160 = vrot.lane.b32.xlu0 %v158, 64
  %v161 = vpop.permute.xlu0 %160
  %v163 = vmul.f32 %v144, %v161
  %165 = vrot.lane.b32.xlu0 %v163, 32
  %v166 = vpop.permute.xlu0 %165
  %v167 = vsel %vm72, %v166, 0
  %169 = vmatpush.msra.mxu0 0.0
  %170 = vmatpush.msra.mxu0 0.0
  %171 = vmatpush.msra.mxu0 0.0
  %172 = vmatpush.msra.mxu0 0.0
  %173 = vmatpush.msra.mxu0 0.0
  %174 = vmatpush.msra.mxu0 0.0
  %175 = vmatpush.msra.mxu0 0.0
  %176 = vmatpush.msra.mxu0 0.0
  %177 = vmatpush.msra.mxu0 0.0
  %178 = vmatpush.msra.mxu0 0.0
  %179 = vmatpush.msra.mxu0 0.0
  %180 = vmatpush.msra.mxu0 0.0
  %181 = vmatpush.msra.mxu0 %v23
  %182 = vmatpush.msra.mxu0 %v22
  %183 = vmatpush.msra.mxu0 %v21
  %184 = vmatpush.msra.mxu0 %v20
  %185 = vmatmul.f32.gmra.mxu0 %v167
  %v186 = vpop.f32.mrf.mxu0
  %v187 = vadd.f32 0.0, %v186
  %188 = vdwg.mxu0
  %v190 = vrot.slane %v187, 6
  %v192 = vadd.f32 %v97, %v190
  %v193 = vxor.u32 %v192, 2147483648
  %v194 = vmul.f32 %v193, 1.442695
  %v195 = vpow.pop %v194
  %v196 = vadd.f32 %v195, 1.0
  %v197 = vrcp.pop %v196
  %v198 = vmul.f32 %v196, %v197
  %v199 = vsub.f32 1.0, %v198
  %v200 = vmul.f32 %v197, %v199
  %v201 = vadd.f32 %v197, %v200
  %vm202 = vweird.f32 %v196
  %vm203 = vweird.f32 %v197
  %vm204 = vmor %vm202, %vm203
  %v205 = vsel %vm204, %v197, %v201
  %v206 = vand.u32 2147483647, %v196
  %vm207 = vcmp.eq.f32.partialorder %v206, 8.507059e+37
  %v208 = vand.u32 %v196, 2147483648
  %v209 = vor.u32 1.1754944e-38, %v208
  %v210 = vsel %vm207, %v209, %v205
  %v211 = vmul.f32 1.0, %v210
  %v212 = vmul.f32 %v211, 2.0
  %v213 = vsub.f32 %v212, 1.0
  %v215 = vrot.slane %v157, 6
  %v217 = vmul.f32 %v211, %v215
  %219 = vrot.lane.b32.xlu0 %v213, 64
  %v220 = vpop.permute.xlu0 %219
  %v222 = vmul.f32 %v211, %v220
  %224 = vrot.lane.b32.xlu0 %v222, 32
  %v225 = vpop.permute.xlu0 %224
  %v227 = vadd.f32 %v217, %v225
  %v228 = vtanh.pop %v227
  %230 = vrot.lane.b32.xlu0 %v228, 64
  %v231 = vpop.permute.xlu0 %230
  %v233 = vmul.f32 %v211, %v231
  %v235 = vrot.slane %v233, 2
  %236 = vrot.lane.b32.xlu0 %v235, 32
  %v237 = vpop.permute.xlu0 %236
  %v238 = vsel %vm72, %v237, 0
  %240 = vmatpush.msra.mxu0 0.0
  %241 = vmatpush.msra.mxu0 0.0
  %242 = vmatpush.msra.mxu0 0.0
  %243 = vmatpush.msra.mxu0 0.0
  %244 = vmatpush.msra.mxu0 0.0
  %245 = vmatpush.msra.mxu0 0.0
  %246 = vmatpush.msra.mxu0 0.0
  %247 = vmatpush.msra.mxu0 0.0
  %248 = vmatpush.msra.mxu0 0.0
  %249 = vmatpush.msra.mxu0 0.0
  %250 = vmatpush.msra.mxu0 0.0
  %251 = vmatpush.msra.mxu0 0.0
  %252 = vmatpush.msra.mxu0 %v23
  %253 = vmatpush.msra.mxu0 %v22
  %254 = vmatpush.msra.mxu0 %v21
  %255 = vmatpush.msra.mxu0 %v20
  %256 = vmatmul.f32.gmra.mxu0 %v238
  %v257 = vpop.f32.mrf.mxu0
  %v258 = vadd.f32 0.0, %v257
  %259 = vdwg.mxu0
  %v261 = vrot.slane %v258, 4
  %v263 = vadd.f32 %v97, %v261
  %v264 = vxor.u32 %v263, 2147483648
  %v265 = vmul.f32 %v264, 1.442695
  %v266 = vpow.pop %v265
  %v267 = vadd.f32 %v266, 1.0
  %v268 = vrcp.pop %v267
  %v269 = vmul.f32 %v267, %v268
  %v270 = vsub.f32 1.0, %v269
  %v271 = vmul.f32 %v268, %v270
  %v272 = vadd.f32 %v268, %v271
  %vm273 = vweird.f32 %v267
  %vm274 = vweird.f32 %v268
  %vm275 = vmor %vm273, %vm274
  %v276 = vsel %vm275, %v268, %v272
  %v277 = vand.u32 2147483647, %v267
  %vm278 = vcmp.eq.f32.partialorder %v277, 8.507059e+37
  %v279 = vand.u32 %v267, 2147483648
  %v280 = vor.u32 1.1754944e-38, %v279
  %v281 = vsel %vm278, %v280, %v276
  %v282 = vmul.f32 1.0, %v281
  %v283 = vmul.f32 %v282, 2.0
  %v284 = vsub.f32 %v283, 1.0
  %v286 = vrot.slane %v227, 6
  %v288 = vmul.f32 %v282, %v286
  %290 = vrot.lane.b32.xlu0 %v284, 64
  %v291 = vpop.permute.xlu0 %290
  %v293 = vmul.f32 %v282, %v291
  %295 = vrot.lane.b32.xlu0 %v293, 32
  %v296 = vpop.permute.xlu0 %295
  %v298 = vadd.f32 %v288, %v296
  %v299 = vtanh.pop %v298
  %301 = vrot.lane.b32.xlu0 %v299, 64
  %v302 = vpop.permute.xlu0 %301
  %v304 = vmul.f32 %v282, %v302
  %v306 = vrot.slane %v304, 4
  %307 = vrot.lane.b32.xlu0 %v306, 32
  %v308 = vpop.permute.xlu0 %307
  %v309 = vsel %vm72, %v308, 0
  %311 = vmatpush.msra.mxu0 0.0
  %312 = vmatpush.msra.mxu0 0.0
  %313 = vmatpush.msra.mxu0 0.0
  %314 = vmatpush.msra.mxu0 0.0
  %315 = vmatpush.msra.mxu0 0.0
  %316 = vmatpush.msra.mxu0 0.0
  %317 = vmatpush.msra.mxu0 0.0
  %318 = vmatpush.msra.mxu0 0.0
  %319 = vmatpush.msra.mxu0 0.0
  %320 = vmatpush.msra.mxu0 0.0
  %321 = vmatpush.msra.mxu0 0.0
  %322 = vmatpush.msra.mxu0 0.0
  %323 = vmatpush.msra.mxu0 %v23
  %324 = vmatpush.msra.mxu0 %v22
  %325 = vmatpush.msra.mxu0 %v21
  %326 = vmatpush.msra.mxu0 %v20
  %327 = vmatmul.f32.gmra.mxu0 %v309
  %v328 = vpop.f32.mrf.mxu0
  %v329 = vadd.f32 0.0, %v328
  %330 = vdwg.mxu0
  %v332 = vrot.slane %v329, 2
  %v334 = vadd.f32 %v97, %v332
  %v335 = vxor.u32 %v334, 2147483648
  %v336 = vmul.f32 %v335, 1.442695
  %v337 = vpow.pop %v336
  %v338 = vadd.f32 %v337, 1.0
  %v339 = vrcp.pop %v338
  %v340 = vmul.f32 %v338, %v339
  %v341 = vsub.f32 1.0, %v340
  %v342 = vmul.f32 %v339, %v341
  %v343 = vadd.f32 %v339, %v342
  %vm344 = vweird.f32 %v338
  %vm345 = vweird.f32 %v339
  %vm346 = vmor %vm344, %vm345
  %v347 = vsel %vm346, %v339, %v343
  %v348 = vand.u32 2147483647, %v338
  %vm349 = vcmp.eq.f32.partialorder %v348, 8.507059e+37
  %v350 = vand.u32 %v338, 2147483648
  %v351 = vor.u32 1.1754944e-38, %v350
  %v352 = vsel %vm349, %v351, %v347
  %v353 = vmul.f32 1.0, %v352
  %v354 = vmul.f32 %v353, 2.0
  %v355 = vsub.f32 %v354, 1.0
  %v357 = vrot.slane %v298, 6
  %v359 = vmul.f32 %v353, %v357
  %361 = vrot.lane.b32.xlu0 %v355, 64
  %v362 = vpop.permute.xlu0 %361
  %v364 = vmul.f32 %v353, %v362
  %366 = vrot.lane.b32.xlu0 %v364, 32
  %v367 = vpop.permute.xlu0 %366
  %v369 = vadd.f32 %v359, %v367
  %v370 = vtanh.pop %v369
  %372 = vrot.lane.b32.xlu0 %v370, 64
  %v373 = vpop.permute.xlu0 %372
  %v375 = vmul.f32 %v353, %v373
  %v377 = vrot.slane %v375, 6
  %378 = vrot.lane.b32.xlu0 %v377, 32
  %v379 = vpop.permute.xlu0 %378
  %v380 = vsel %vm72, %v379, 0
  %382 = vmatpush.msra.mxu0 0.0
  %383 = vmatpush.msra.mxu0 0.0
  %384 = vmatpush.msra.mxu0 0.0
  %385 = vmatpush.msra.mxu0 0.0
  %386 = vmatpush.msra.mxu0 0.0
  %387 = vmatpush.msra.mxu0 0.0
  %388 = vmatpush.msra.mxu0 0.0
  %389 = vmatpush.msra.mxu0 0.0
  %390 = vmatpush.msra.mxu0 0.0
  %391 = vmatpush.msra.mxu0 0.0
  %392 = vmatpush.msra.mxu0 0.0
  %393 = vmatpush.msra.mxu0 0.0
  %394 = vmatpush.msra.mxu0 %v23
  %395 = vmatpush.msra.mxu0 %v22
  %396 = vmatpush.msra.mxu0 %v21
  %397 = vmatpush.msra.mxu0 %v20
  %398 = vmatmul.f32.gmra.mxu0 %v380
  %v399 = vpop.f32.mrf.mxu0
  %v400 = vadd.f32 0.0, %v399
  %401 = vdwg.mxu0
  %v402 = vadd.f32 %v100, %v400
  %v403 = vxor.u32 %v402, 2147483648
  %v404 = vmul.f32 %v403, 1.442695
  %v405 = vpow.pop %v404
  %v406 = vadd.f32 %v405, 1.0
  %v407 = vrcp.pop %v406
  %v408 = vmul.f32 %v406, %v407
  %v409 = vsub.f32 1.0, %v408
  %v410 = vmul.f32 %v407, %v409
  %v411 = vadd.f32 %v407, %v410
  %vm412 = vweird.f32 %v406
  %vm413 = vweird.f32 %v407
  %vm414 = vmor %vm412, %vm413
  %v415 = vsel %vm414, %v407, %v411
  %v416 = vand.u32 2147483647, %v406
  %vm417 = vcmp.eq.f32.partialorder %v416, 8.507059e+37
  %v418 = vand.u32 %v406, 2147483648
  %v419 = vor.u32 1.1754944e-38, %v418
  %v420 = vsel %vm417, %v419, %v415
  %v421 = vmul.f32 1.0, %v420
  %v422 = vmul.f32 %v421, 2.0
  %v423 = vsub.f32 %v422, 1.0
  %v425 = vrot.slane %v369, 6
  %v427 = vmul.f32 %v421, %v425
  %429 = vrot.lane.b32.xlu0 %v423, 64
  %v430 = vpop.permute.xlu0 %429
  %v432 = vmul.f32 %v421, %v430
  %434 = vrot.lane.b32.xlu0 %v432, 32
  %v435 = vpop.permute.xlu0 %434
  %v437 = vadd.f32 %v427, %v435
  %v438 = vtanh.pop %v437
  %440 = vrot.lane.b32.xlu0 %v438, 64
  %v441 = vpop.permute.xlu0 %440
  %v443 = vmul.f32 %v421, %v441
  %445 = vrot.lane.b32.xlu0 %v443, 32
  %v446 = vpop.permute.xlu0 %445
  %v447 = vsel %vm72, %v446, 0
  %449 = vmatpush.msra.mxu0 0.0
  %450 = vmatpush.msra.mxu0 0.0
  %451 = vmatpush.msra.mxu0 0.0
  %452 = vmatpush.msra.mxu0 0.0
  %453 = vmatpush.msra.mxu0 0.0
  %454 = vmatpush.msra.mxu0 0.0
  %455 = vmatpush.msra.mxu0 0.0
  %456 = vmatpush.msra.mxu0 0.0
  %457 = vmatpush.msra.mxu0 0.0
  %458 = vmatpush.msra.mxu0 0.0
  %459 = vmatpush.msra.mxu0 0.0
  %460 = vmatpush.msra.mxu0 0.0
  %461 = vmatpush.msra.mxu0 %v23
  %462 = vmatpush.msra.mxu0 %v22
  %463 = vmatpush.msra.mxu0 %v21
  %464 = vmatpush.msra.mxu0 %v20
  %465 = vmatmul.f32.gmra.mxu0 %v447
  %v466 = vpop.f32.mrf.mxu0
  %v467 = vadd.f32 0.0, %v466
  %468 = vdwg.mxu0
  %v470 = vrot.slane %v467, 6
  %v472 = vadd.f32 %v100, %v470
  %v473 = vxor.u32 %v472, 2147483648
  %v474 = vmul.f32 %v473, 1.442695
  %v475 = vpow.pop %v474
  %v476 = vadd.f32 %v475, 1.0
  %v477 = vrcp.pop %v476
  %v478 = vmul.f32 %v476, %v477
  %v479 = vsub.f32 1.0, %v478
  %v480 = vmul.f32 %v477, %v479
  %v481 = vadd.f32 %v477, %v480
  %vm482 = vweird.f32 %v476
  %vm483 = vweird.f32 %v477
  %vm484 = vmor %vm482, %vm483
  %v485 = vsel %vm484, %v477, %v481
  %v486 = vand.u32 2147483647, %v476
  %vm487 = vcmp.eq.f32.partialorder %v486, 8.507059e+37
  %v488 = vand.u32 %v476, 2147483648
  %v489 = vor.u32 1.1754944e-38, %v488
  %v490 = vsel %vm487, %v489, %v485
  %v491 = vmul.f32 1.0, %v490
  %v492 = vmul.f32 %v491, 2.0
  %v493 = vsub.f32 %v492, 1.0
  %v495 = vrot.slane %v437, 6
  %v497 = vmul.f32 %v491, %v495
  %499 = vrot.lane.b32.xlu0 %v493, 64
  %v500 = vpop.permute.xlu0 %499
  %v502 = vmul.f32 %v491, %v500
  %504 = vrot.lane.b32.xlu0 %v502, 32
  %v505 = vpop.permute.xlu0 %504
  %v507 = vadd.f32 %v497, %v505
  %v508 = vtanh.pop %v507
  %510 = vrot.lane.b32.xlu0 %v508, 64
  %v511 = vpop.permute.xlu0 %510
  %v513 = vmul.f32 %v491, %v511
  %v515 = vrot.slane %v513, 2
  %516 = vrot.lane.b32.xlu0 %v515, 32
  %v517 = vpop.permute.xlu0 %516
  %v518 = vsel %vm72, %v517, 0
  %520 = vmatpush.msra.mxu0 0.0
  %521 = vmatpush.msra.mxu0 0.0
  %522 = vmatpush.msra.mxu0 0.0
  %523 = vmatpush.msra.mxu0 0.0
  %524 = vmatpush.msra.mxu0 0.0
  %525 = vmatpush.msra.mxu0 0.0
  %526 = vmatpush.msra.mxu0 0.0
  %527 = vmatpush.msra.mxu0 0.0
  %528 = vmatpush.msra.mxu0 0.0
  %529 = vmatpush.msra.mxu0 0.0
  %530 = vmatpush.msra.mxu0 0.0
  %531 = vmatpush.msra.mxu0 0.0
  %532 = vmatpush.msra.mxu0 %v23
  %533 = vmatpush.msra.mxu0 %v22
  %534 = vmatpush.msra.mxu0 %v21
  %535 = vmatpush.msra.mxu0 %v20
  %536 = vmatmul.f32.gmra.mxu0 %v518
  %v537 = vpop.f32.mrf.mxu0
  %v538 = vadd.f32 0.0, %v537
  %539 = vdwg.mxu0
  %v541 = vrot.slane %v538, 4
  %v543 = vadd.f32 %v100, %v541
  %v544 = vxor.u32 %v543, 2147483648
  %v545 = vmul.f32 %v544, 1.442695
  %v546 = vpow.pop %v545
  %v547 = vadd.f32 %v546, 1.0
  %v548 = vrcp.pop %v547
  %v549 = vmul.f32 %v547, %v548
  %v550 = vsub.f32 1.0, %v549
  %v551 = vmul.f32 %v548, %v550
  %v552 = vadd.f32 %v548, %v551
  %vm553 = vweird.f32 %v547
  %vm554 = vweird.f32 %v548
  %vm555 = vmor %vm553, %vm554
  %v556 = vsel %vm555, %v548, %v552
  %v557 = vand.u32 2147483647, %v547
  %vm558 = vcmp.eq.f32.partialorder %v557, 8.507059e+37
  %v559 = vand.u32 %v547, 2147483648
  %v560 = vor.u32 1.1754944e-38, %v559
  %v561 = vsel %vm558, %v560, %v556
  %v562 = vmul.f32 1.0, %v561
  %v563 = vmul.f32 %v562, 2.0
  %v564 = vsub.f32 %v563, 1.0
  %v566 = vrot.slane %v507, 6
  %v568 = vmul.f32 %v562, %v566
  %570 = vrot.lane.b32.xlu0 %v564, 64
  %v571 = vpop.permute.xlu0 %570
  %v573 = vmul.f32 %v562, %v571
  %575 = vrot.lane.b32.xlu0 %v573, 32
  %v576 = vpop.permute.xlu0 %575
  %v578 = vadd.f32 %v568, %v576
  %v579 = vtanh.pop %v578
  %581 = vrot.lane.b32.xlu0 %v579, 64
  %v582 = vpop.permute.xlu0 %581
  %v584 = vmul.f32 %v562, %v582
  %v586 = vrot.slane %v584, 4
  %587 = vrot.lane.b32.xlu0 %v586, 32
  %v588 = vpop.permute.xlu0 %587
  %v589 = vsel %vm72, %v588, 0
  %591 = vmatpush.msra.mxu0 0.0
  %592 = vmatpush.msra.mxu0 0.0
  %593 = vmatpush.msra.mxu0 0.0
  %594 = vmatpush.msra.mxu0 0.0
  %595 = vmatpush.msra.mxu0 0.0
  %596 = vmatpush.msra.mxu0 0.0
  %597 = vmatpush.msra.mxu0 0.0
  %598 = vmatpush.msra.mxu0 0.0
  %599 = vmatpush.msra.mxu0 0.0
  %600 = vmatpush.msra.mxu0 0.0
  %601 = vmatpush.msra.mxu0 0.0
  %602 = vmatpush.msra.mxu0 0.0
  %603 = vmatpush.msra.mxu0 %v23
  %604 = vmatpush.msra.mxu0 %v22
  %605 = vmatpush.msra.mxu0 %v21
  %606 = vmatpush.msra.mxu0 %v20
  %607 = vmatmul.f32.gmra.mxu0 %v589
  %v608 = vpop.f32.mrf.mxu0
  %v609 = vadd.f32 0.0, %v608
  %610 = vdwg.mxu0
  %v612 = vrot.slane %v609, 2
  %v614 = vadd.f32 %v100, %v612
  %v615 = vxor.u32 %v614, 2147483648
  %v616 = vmul.f32 %v615, 1.442695
  %v617 = vpow.pop %v616
  %v618 = vadd.f32 %v617, 1.0
  %v619 = vrcp.pop %v618
  %v620 = vmul.f32 %v618, %v619
  %v621 = vsub.f32 1.0, %v620
  %v622 = vmul.f32 %v619, %v621
  %v623 = vadd.f32 %v619, %v622
  %vm624 = vweird.f32 %v618
  %vm625 = vweird.f32 %v619
  %vm626 = vmor %vm624, %vm625
  %v627 = vsel %vm626, %v619, %v623
  %v628 = vand.u32 2147483647, %v618
  %vm629 = vcmp.eq.f32.partialorder %v628, 8.507059e+37
  %v630 = vand.u32 %v618, 2147483648
  %v631 = vor.u32 1.1754944e-38, %v630
  %v632 = vsel %vm629, %v631, %v627
  %v633 = vmul.f32 1.0, %v632
  %v634 = vmul.f32 %v633, 2.0
  %v635 = vsub.f32 %v634, 1.0
  %v637 = vrot.slane %v578, 6
  %v639 = vmul.f32 %v633, %v637
  %641 = vrot.lane.b32.xlu0 %v635, 64
  %v642 = vpop.permute.xlu0 %641
  %v644 = vmul.f32 %v633, %v642
  %646 = vrot.lane.b32.xlu0 %v644, 32
  %v647 = vpop.permute.xlu0 %646
  %v649 = vadd.f32 %v639, %v647
  %v650 = vtanh.pop %v649
  %652 = vrot.lane.b32.xlu0 %v650, 64
  %v653 = vpop.permute.xlu0 %652
  %v655 = vmul.f32 %v633, %v653
  %vm656 = vcmask 1041408
  %v657 = vsel %vm656, %v163, %v233
  %vm658 = vcmask 1043456
  %v659 = vsel %vm658, %v657, %v304
  %vm660 = vcmask 1045504
  %v661 = vsel %vm660, %v659, %v375
  %v662 = vsel %vm656, %v443, %v513
  %v663 = vsel %vm658, %v662, %v584
  %v664 = vsel %vm660, %v663, %v655
  %v665 = vld [vmem:[%s1] sm:$0xff]
  %v666 = vld [vmem:[%s1 + $0x8] sm:$0xff]
  %668 = vset.pattern.permute.xlu0 0
  %669 = vperm.xlu0 %668, %v665
  %v670 = vpop.permute.xlu0 %669
  %673 = vset.pattern.permute.xlu0 0
  %674 = vperm.xlu0 %673, %v666
  %v675 = vpop.permute.xlu0 %674
  %v677 = vperm.slane %v29, 0
  %v678 = vmul.f32 %v670, %v677
  %v679 = vmul.f32 %v675, %v677
  %682 = vrot.lane.b32.xlu0 %v661, 32
  %v683 = vpop.permute.xlu0 %682
  %684 = vrot.lane.b32.xlu0 %v664, 32
  %v685 = vpop.permute.xlu0 %684
  %v686 = vsel %vm72, %v683, 0
  %v688 = vsel %vm72, %v685, 0
  %690 = vmatpush.msra.mxu0 0.0
  %691 = vmatpush.msra.mxu0 0.0
  %692 = vmatpush.msra.mxu0 0.0
  %693 = vmatpush.msra.mxu0 0.0
  %694 = vmatpush.msra.mxu0 0.0
  %695 = vmatpush.msra.mxu0 0.0
  %696 = vmatpush.msra.mxu0 0.0
  %697 = vmatpush.msra.mxu0 0.0
  %698 = vmatpush.msra.mxu0 0.0
  %699 = vmatpush.msra.mxu0 0.0
  %700 = vmatpush.msra.mxu0 0.0
  %701 = vmatpush.msra.mxu0 0.0
  %702 = vmatpush.msra.mxu0 %v28
  %703 = vmatpush.msra.mxu0 %v27
  %704 = vmatpush.msra.mxu0 %v26
  %705 = vmatpush.msra.mxu0 %v25
  %706 = vmatmul.f32.gmra.mxu0 %v686
  %v707 = vpop.f32.mrf.mxu0
  %v708 = vadd.f32 %v678, %v707
  %709 = vmatmul.f32.gmra.mxu0 %v688
  %v710 = vpop.f32.mrf.mxu0
  %v711 = vadd.f32 %v679, %v710
  %712 = vdwg.mxu0
  %v713 = vperm.slane %v30, 0
  %v714 = vadd.f32 %v708, %v713
  %v715 = vadd.f32 %v711, %v713
  %v716 = vmax.f32 %v714, 0.0
  %v717 = vmax.f32 %v715, 0.0
  %v718 = vperm.slane %v35, 0
  %v720 = vsel %vm72, %v716, 0
  %v723 = vsel %vm72, %v717, 0
  %725 = vmatpush.msra.mxu0 0.0
  %726 = vmatpush.msra.mxu0 0.0
  %727 = vmatpush.msra.mxu0 0.0
  %728 = vmatpush.msra.mxu0 0.0
  %729 = vmatpush.msra.mxu0 0.0
  %730 = vmatpush.msra.mxu0 0.0
  %731 = vmatpush.msra.mxu0 0.0
  %732 = vmatpush.msra.mxu0 0.0
  %733 = vmatpush.msra.mxu0 0.0
  %734 = vmatpush.msra.mxu0 0.0
  %735 = vmatpush.msra.mxu0 0.0
  %736 = vmatpush.msra.mxu0 0.0
  %737 = vmatpush.msra.mxu0 %v34
  %738 = vmatpush.msra.mxu0 %v33
  %739 = vmatpush.msra.mxu0 %v32
  %740 = vmatpush.msra.mxu0 %v31
  %741 = vmatmul.f32.gmra.mxu0 %v720
  %v742 = vpop.f32.mrf.mxu0
  %v743 = vadd.f32 %v718, %v742
  %744 = vmatmul.f32.gmra.mxu0 %v723
  %v745 = vpop.f32.mrf.mxu0
  %v746 = vadd.f32 %v718, %v745
  %747 = vdwg.mxu0
  %vm748 = vcmask 31744
  %749 = vst.msk [vmem:[%s3] sm:$0xff] %vm748, %v743
  %750 = vst.msk [vmem:[%s3 + $0x8] sm:$0xff] %vm748, %v746
  // Predicated region
  $region14: #{simple_model_forward.1} parent=0 // pred_check
    _
  $region15: #{simple_model_forward.1} parent=0 // pred_check_branch
    %752 = sbr.rel (0) target = $region17
  $region16: #{simple_model_forward.1} parent=0 // pred_region
    _
  $region17: #{simple_model_forward.1} parent=0 // pred_fallthru
    _
  // Predicated region
  $region18: #{simple_model_forward.1} parent=0 // pred_check
    _
  $region19: #{simple_model_forward.1} parent=0 // pred_check_branch
    %754 = sbr.rel (0) target = $region21
  $region20: #{simple_model_forward.1} parent=0 // pred_region
    _
  $region21: #{simple_model_forward.1} parent=0 // pred_fallthru
    _

</llo_original>
